<compile_context>
chip_gen: v5e
topology: v5e:2x2
jax: 0.10.0
libtpu: 0.0.40
codegen_flags: <defaults>
</compile_context>

<pallas_src>
import functools

import jax
import jax.numpy as jnp
from jax.experimental import pallas as pl
from jax.experimental.pallas import tpu as pltpu

LANE = 128


def _round_up(n: int, m: int) -> int:
    return ((n + m - 1) // m) * m


def mlp_kernel(x_ref, w1_ref, b1_ref, w2_ref, b2_ref, w3_ref, b3_ref, o_ref):
    # x arrives f32; cast to bf16 on the VPU just before the MXU dot.
    x = x_ref[...].astype(jnp.bfloat16)
    # Layer 1: bf16 MXU matmul, f32 accumulation, f32 bias + ReLU.
    h1 = jnp.dot(x, w1_ref[...], preferred_element_type=jnp.float32)
    h1 = jnp.maximum(h1 + b1_ref[...], 0.0)
    # Layer 2.
    h2 = jnp.dot(h1.astype(jnp.bfloat16), w2_ref[...],
                 preferred_element_type=jnp.float32)
    h2 = jnp.maximum(h2 + b2_ref[...], 0.0)
    # Layer 3: lane-dense (128-wide) compute; padded lanes carry a -1e30 f32
    # bias so exp() drives them to exactly 0 under softmax.
    logits = jnp.dot(h2.astype(jnp.bfloat16), w3_ref[...],
                     preferred_element_type=jnp.float32)
    logits = logits + b3_ref[...]
    # Numerically stable softmax over the last dim (== nn.Softmax(dim=1)).
    m = jnp.max(logits, axis=-1, keepdims=True)
    e = jnp.exp(logits - m)
    denom = jnp.sum(e, axis=-1, keepdims=True)
    probs = e * pl.reciprocal(denom, approx=True)
    # Narrow store: only the real output columns hit HBM (40 B/row f32).
    o_ref[...] = probs[:, : o_ref.shape[1]].astype(o_ref.dtype)


def _choose_batch_tile(batch: int, block_b: int) -> int:
    """Multiple-of-16 batch tile; for medium batches aim for >=2 grid steps so
    the 'parallel' axis shards across both v7x TensorCores."""
    b16 = _round_up(batch, 16)
    if b16 <= 16:
        return 16
    half = _round_up((b16 + 1) // 2, 16)
    return min(block_b, half)


@functools.partial(jax.jit, static_argnames=("output_size", "block_b"))
def rl_model_forward(x, w1, b1, w2, b2, w3p, b3p, *, output_size, block_b=1024):
    """x: (B, input_size) f32 (cast to bf16 inside the kernel).

    w1/w2: bf16, pre-transposed to (in, out). b1/b2: f32 (1, out).
    w3p/b3p: layer-3 weights/bias padded to a multiple of 128 output columns
    (bf16 / f32), padded bias entries = -1e30.
    Returns (B, output_size) f32 softmax probabilities.
    """
    B, in_size = x.shape
    hidden = w1.shape[1]
    out_pad = w3p.shape[1]

    tb = _choose_batch_tile(B, block_b)
    b_pad = _round_up(B, tb)
    if b_pad != B:
        x = jnp.pad(x, ((0, b_pad - B), (0, 0)))

    grid = (b_pad // tb,)
    resident = lambda i: (0, 0)  # same block every step -> stays in VMEM

    out = pl.pallas_call(
        mlp_kernel,
        out_shape=jax.ShapeDtypeStruct((b_pad, output_size), jnp.float32),
        grid=grid,
        in_specs=[
            pl.BlockSpec((tb, in_size), lambda i: (i, 0)),      # x tile (streamed, f32)
            pl.BlockSpec((in_size, hidden), resident),          # w1 (bf16)
            pl.BlockSpec((1, hidden), resident),                # b1 (f32)
            pl.BlockSpec((hidden, hidden), resident),           # w2 (bf16)
            pl.BlockSpec((1, hidden), resident),                # b2 (f32)
            pl.BlockSpec((hidden, out_pad), resident),          # w3 (bf16, lane-padded)
            pl.BlockSpec((1, out_pad), resident),               # b3 (f32, -1e30 padding)
        ],
        out_specs=pl.BlockSpec((tb, output_size), lambda i: (i, 0)),
        compiler_params=pltpu.CompilerParams(
            dimension_semantics=("parallel",),
            vmem_limit_bytes=32 * 1024 * 1024,
        ),
    )(x, w1, b1, w2, b2, w3p, b3p)

    if b_pad != B:
        out = out[:B]   # tiny row-only slice on the already-narrow f32 buffer
    return out


def init_params(key, input_size, hidden_size, output_size):
    """PyTorch-Linear-style init (uniform +-1/sqrt(fan_in)), weights stored as
    (in_features, out_features), biases as (1, out_features), all f32."""
    ks = jax.random.split(key, 6)

    def linear(kw, kb, fan_in, fan_out):
        bound = 1.0 / jnp.sqrt(fan_in)
        w = jax.random.uniform(kw, (fan_in, fan_out), jnp.float32, -bound, bound)
        b = jax.random.uniform(kb, (1, fan_out), jnp.float32, -bound, bound)
        return w, b

    w1, b1 = linear(ks[0], ks[1], input_size, hidden_size)
    w2, b2 = linear(ks[2], ks[3], hidden_size, hidden_size)
    w3, b3 = linear(ks[4], ks[5], hidden_size, output_size)
    return w1, b1, w2, b2, w3, b3


def prepare_kernel_params(w1, b1, w2, b2, w3, b3):
    """Cast weights to bf16 and pad layer 3 to a lane-dense (multiple-of-128)
    width for in-kernel compute. Padded bias entries are -1e30 (f32) so softmax
    zeroes them; logits/bias must stay f32 for this trick to hold."""
    out_size = w3.shape[1]
    out_pad = _round_up(out_size, LANE)
    w3p = jnp.pad(w3, ((0, 0), (0, out_pad - out_size)))
    b3p = jnp.pad(b3, ((0, 0), (0, out_pad - out_size)),
                  constant_values=-1e30)
    return (w1.astype(jnp.bfloat16), b1,
            w2.astype(jnp.bfloat16), b2,
            w3p.astype(jnp.bfloat16), b3p)


def reference_forward(x, w1, b1, w2, b2, w3, b3):
    """Pure-JAX reference mirroring the kernel's bf16-MXU / f32-accumulate math."""
    h1 = jnp.dot(x.astype(jnp.bfloat16), w1.astype(jnp.bfloat16),
                 preferred_element_type=jnp.float32)
    h1 = jnp.maximum(h1 + b1, 0.0)
    h2 = jnp.dot(h1.astype(jnp.bfloat16), w2.astype(jnp.bfloat16),
                 preferred_element_type=jnp.float32)
    h2 = jnp.maximum(h2 + b2, 0.0)
    logits = jnp.dot(h2.astype(jnp.bfloat16), w3.astype(jnp.bfloat16),
                     preferred_element_type=jnp.float32) + b3
    return jax.nn.softmax(logits, axis=1)


if __name__ == "__main__":
    input_size, hidden_size, output_size = 32, 128, 10

    key = jax.random.PRNGKey(0)
    kx, kp = jax.random.split(key)
    params = init_params(kp, input_size, hidden_size, output_size)
    kparams = prepare_kernel_params(*params)

    # Small batch (single grid step) and a non-multiple-of-tile batch
    # (exercises batch padding + a 2-step grid with VMEM-resident weights,
    # i.e. the v7x dual-TensorCore sharding path).
    for batch, bb in ((8, 1024), (200, 1024)):
        x = jax.random.normal(kx, (batch, input_size), dtype=jnp.float32)

        out = rl_model_forward(x, *kparams, output_size=output_size, block_b=bb)
        out = jax.block_until_ready(out)

        ref = reference_forward(x, *params)
        assert out.shape == (batch, output_size)
        assert jnp.allclose(out, ref, atol=2e-3, rtol=2e-3), "mismatch vs reference"
        assert jnp.allclose(jnp.sum(out, axis=1), 1.0, atol=5e-3), \
            "softmax rows must sum to ~1"

    print("KERNEL_OK")
</pallas_src>

<mosaic_0001>
module attributes {stable_mosaic.version = 11 : i64} {
  func.func @mlp_kernel(%arg0: i32, %arg1: memref<16x32xf32, #tpu.memory_space<vmem>>, %arg2: memref<32x128xbf16, #tpu.memory_space<vmem>>, %arg3: memref<1x128xf32, #tpu.memory_space<vmem>>, %arg4: memref<128x128xbf16, #tpu.memory_space<vmem>>, %arg5: memref<1x128xf32, #tpu.memory_space<vmem>>, %arg6: memref<128x128xbf16, #tpu.memory_space<vmem>>, %arg7: memref<1x128xf32, #tpu.memory_space<vmem>>, %arg8: memref<16x10xf32, #tpu.memory_space<vmem>>) attributes {dimension_semantics = [#tpu.dimension_semantics<parallel>], iteration_bounds = array<i64: 1>, scalar_prefetch = 0 : i64, scratch_operands = 0 : i64, tpu.core_type = #tpu.core_type<tc>, window_params = [{transform_indices = @transform_0, window_bounds = array<i64: 16, 32>}, {pipeline_mode = #tpu.pipeline_mode<synchronous>, transform_indices = @transform_1, window_bounds = array<i64: 32, 128>}, {pipeline_mode = #tpu.pipeline_mode<synchronous>, transform_indices = @transform_2, window_bounds = array<i64: 1, 128>}, {pipeline_mode = #tpu.pipeline_mode<synchronous>, transform_indices = @transform_3, window_bounds = array<i64: 128, 128>}, {pipeline_mode = #tpu.pipeline_mode<synchronous>, transform_indices = @transform_4, window_bounds = array<i64: 1, 128>}, {pipeline_mode = #tpu.pipeline_mode<synchronous>, transform_indices = @transform_5, window_bounds = array<i64: 128, 128>}, {pipeline_mode = #tpu.pipeline_mode<synchronous>, transform_indices = @transform_6, window_bounds = array<i64: 1, 128>}, {transform_indices = @transform_7, window_bounds = array<i64: 16, 10>}]} {
    %c0 = arith.constant 0 : index
    %c0_0 = arith.constant 0 : index
    %0 = vector.load %arg1[%c0, %c0_0] : memref<16x32xf32, #tpu.memory_space<vmem>>, vector<16x32xf32>
    %1 = arith.truncf %0 : vector<16x32xf32> to vector<16x32xbf16>
    %c0_1 = arith.constant 0 : index
    %c0_2 = arith.constant 0 : index
    %2 = vector.load %arg2[%c0_1, %c0_2] : memref<32x128xbf16, #tpu.memory_space<vmem>>, vector<32x128xbf16>
    %cst = arith.constant dense<0.000000e+00> : vector<16x128xf32>
    %3 = tpu.matmul %1, %2, %cst {dimension_numbers = #tpu.dot_dimension_numbers<[1], [0], [0], [1], [0, 0, 1, 1], [], []>} : vector<16x32xbf16>, vector<32x128xbf16>, vector<16x128xf32> -> vector<16x128xf32>
    %c0_3 = arith.constant 0 : index
    %c0_4 = arith.constant 0 : index
    %4 = vector.load %arg3[%c0_3, %c0_4] : memref<1x128xf32, #tpu.memory_space<vmem>>, vector<1x128xf32>
    %5 = vector.broadcast %4 : vector<1x128xf32> to vector<16x128xf32>
    %6 = arith.addf %3, %5 : vector<16x128xf32>
    %cst_5 = arith.constant 0.000000e+00 : f32
    %7 = vector.broadcast %cst_5 : f32 to vector<16x128xf32>
    %8 = arith.maximumf %6, %7 : vector<16x128xf32>
    %9 = arith.truncf %8 : vector<16x128xf32> to vector<16x128xbf16>
    %c0_6 = arith.constant 0 : index
    %c0_7 = arith.constant 0 : index
    %10 = vector.load %arg4[%c0_6, %c0_7] : memref<128x128xbf16, #tpu.memory_space<vmem>>, vector<128x128xbf16>
    %cst_8 = arith.constant dense<0.000000e+00> : vector<16x128xf32>
    %11 = tpu.matmul %9, %10, %cst_8 {dimension_numbers = #tpu.dot_dimension_numbers<[1], [0], [0], [1], [0, 0, 1, 1], [], []>} : vector<16x128xbf16>, vector<128x128xbf16>, vector<16x128xf32> -> vector<16x128xf32>
    %c0_9 = arith.constant 0 : index
    %c0_10 = arith.constant 0 : index
    %12 = vector.load %arg5[%c0_9, %c0_10] : memref<1x128xf32, #tpu.memory_space<vmem>>, vector<1x128xf32>
    %13 = vector.broadcast %12 : vector<1x128xf32> to vector<16x128xf32>
    %14 = arith.addf %11, %13 : vector<16x128xf32>
    %cst_11 = arith.constant 0.000000e+00 : f32
    %15 = vector.broadcast %cst_11 : f32 to vector<16x128xf32>
    %16 = arith.maximumf %14, %15 : vector<16x128xf32>
    %17 = arith.truncf %16 : vector<16x128xf32> to vector<16x128xbf16>
    %c0_12 = arith.constant 0 : index
    %c0_13 = arith.constant 0 : index
    %18 = vector.load %arg6[%c0_12, %c0_13] : memref<128x128xbf16, #tpu.memory_space<vmem>>, vector<128x128xbf16>
    %cst_14 = arith.constant dense<0.000000e+00> : vector<16x128xf32>
    %19 = tpu.matmul %17, %18, %cst_14 {dimension_numbers = #tpu.dot_dimension_numbers<[1], [0], [0], [1], [0, 0, 1, 1], [], []>} : vector<16x128xbf16>, vector<128x128xbf16>, vector<16x128xf32> -> vector<16x128xf32>
    %c0_15 = arith.constant 0 : index
    %c0_16 = arith.constant 0 : index
    %20 = vector.load %arg7[%c0_15, %c0_16] : memref<1x128xf32, #tpu.memory_space<vmem>>, vector<1x128xf32>
    %21 = vector.broadcast %20 : vector<1x128xf32> to vector<16x128xf32>
    %22 = arith.addf %19, %21 : vector<16x128xf32>
    %cst_17 = arith.constant dense<0xFF800000> : vector<16xf32>
    %23 = vector.multi_reduction <maximumf>, %22, %cst_17 [1] : vector<16x128xf32> to vector<16xf32>
    %24 = vector.shape_cast %23 : vector<16xf32> to vector<16x1xf32>
    %25 = vector.broadcast %24 : vector<16x1xf32> to vector<16x128xf32>
    %26 = arith.subf %22, %25 : vector<16x128xf32>
    %27 = math.exp %26 : vector<16x128xf32>
    %cst_18 = arith.constant dense<0.000000e+00> : vector<16xf32>
    %28 = vector.multi_reduction <add>, %27, %cst_18 [1] : vector<16x128xf32> to vector<16xf32>
    %29 = vector.shape_cast %28 : vector<16xf32> to vector<16x1xf32>
    %30 = tpu.reciprocal %29 {approx = true} : vector<16x1xf32> -> vector<16x1xf32>
    %31 = vector.broadcast %30 : vector<16x1xf32> to vector<16x128xf32>
    %32 = arith.mulf %27, %31 : vector<16x128xf32>
    %33 = vector.extract_strided_slice %32 {offsets = [0, 0], sizes = [16, 10], strides = [1, 1]} : vector<16x128xf32> to vector<16x10xf32>
    %c0_19 = arith.constant 0 : index
    %c0_20 = arith.constant 0 : index
    %34 = vector.load %arg8[%c0_19, %c0_20] : memref<16x10xf32, #tpu.memory_space<vmem>>, vector<16x10xf32>
    tpu.vector_store %arg8[%c0_19, %c0_20], %33 {strides = array<i32>} : memref<16x10xf32, #tpu.memory_space<vmem>>, vector<16x10xf32>,
    return
  }
  func.func @transform_0(%arg0: i32) -> (i32, i32) {
    %c0_i32 = arith.constant 0 : i32
    %c0_i32_0 = arith.constant 0 : i32
    return %arg0, %c0_i32 : i32, i32
  }
  func.func @transform_1(%arg0: i32) -> (i32, i32) {
    %c0_i32 = arith.constant 0 : i32
    %c0_i32_0 = arith.constant 0 : i32
    %c0_i32_1 = arith.constant 0 : i32
    return %c0_i32, %c0_i32_0 : i32, i32
  }
  func.func @transform_2(%arg0: i32) -> (i32, i32) {
    %c0_i32 = arith.constant 0 : i32
    %c0_i32_0 = arith.constant 0 : i32
    %c0_i32_1 = arith.constant 0 : i32
    return %c0_i32, %c0_i32_0 : i32, i32
  }
  func.func @transform_3(%arg0: i32) -> (i32, i32) {
    %c0_i32 = arith.constant 0 : i32
    %c0_i32_0 = arith.constant 0 : i32
    %c0_i32_1 = arith.constant 0 : i32
    return %c0_i32, %c0_i32_0 : i32, i32
  }
  func.func @transform_4(%arg0: i32) -> (i32, i32) {
    %c0_i32 = arith.constant 0 : i32
    %c0_i32_0 = arith.constant 0 : i32
    %c0_i32_1 = arith.constant 0 : i32
    return %c0_i32, %c0_i32_0 : i32, i32
  }
  func.func @transform_5(%arg0: i32) -> (i32, i32) {
    %c0_i32 = arith.constant 0 : i32
    %c0_i32_0 = arith.constant 0 : i32
    %c0_i32_1 = arith.constant 0 : i32
    return %c0_i32, %c0_i32_0 : i32, i32
  }
  func.func @transform_6(%arg0: i32) -> (i32, i32) {
    %c0_i32 = arith.constant 0 : i32
    %c0_i32_0 = arith.constant 0 : i32
    %c0_i32_1 = arith.constant 0 : i32
    return %c0_i32, %c0_i32_0 : i32, i32
  }
  func.func @transform_7(%arg0: i32) -> (i32, i32) {
    %c0_i32 = arith.constant 0 : i32
    %c0_i32_0 = arith.constant 0 : i32
    return %arg0, %c0_i32 : i32, i32
  }
}

</mosaic_0001>

<llo_original>
// kernel: rl_model_forward.1
$region0: #{rl_model_forward.1}
  #allocation0 [shape = 'u32[]', space=smem, size = 0x4, offset = 0x4, fixed_abs, tag = 'smem constant byte address 0x4 - core index']
  #allocation1 [shape = 'u32[72,128]{1,0:T(1,128)}', space=vmem, size = 0x9000, scoped, tag = 'internal scratch']
  %s0 = inlined_call_operand.vmem [shape: f32[16,32], index: 0, kind: input, shape index: {}]
  %s1 = inlined_call_operand.vmem [shape: bf16[32,128], index: 1, kind: input, shape index: {}]
  %s2 = inlined_call_operand.vmem [shape: f32[1,128], index: 2, kind: input, shape index: {}]
  %s3 = inlined_call_operand.hbm [shape: bf16[128,128], index: 3, kind: input, shape index: {}]
  %s4 = inlined_call_operand.vmem [shape: f32[1,128], index: 4, kind: input, shape index: {}]
  %s5 = inlined_call_operand.hbm [shape: bf16[128,128], index: 5, kind: input, shape index: {}]
  %s6 = inlined_call_operand.vmem [shape: f32[1,128], index: 6, kind: input, shape index: {}]
  %s7 = inlined_call_operand.vmem [shape: f32[16,10], index: 7, kind: output, shape index: {}]
  %s8 = sld [smem:[#allocation0]]
  $region46: #{rl_model_forward.1} parent=0
    _
  %s10 = ssub.s32 1, %s8
  %s11 = scalar_select 0, %s10, %s8
  $region1: #{rl_model_forward.1} parent=0
    #allocation2 [shape = 'u8[32768]{0}', space=vmem, size = 0x8000, scoped, tag = 'input window, operand 3, single buffered']
    #allocation3 [shape = 's32[1]{0}', space=sflag, size = 0x4, scoped, tag = 'scoped memory for rl_model_forward.1']
    #allocation4 [shape = 'u8[32768]{0}', space=vmem, size = 0x8000, scoped, tag = 'input window, operand 5, single buffered']
    #allocation5 [shape = 's32[1]{0}', space=sflag, size = 0x4, scoped, tag = 'scoped memory for rl_model_forward.1']
    %12 = vsyncpa [#allocation3], 0
    %13 = vsyncpa [#allocation5], 0
    // Predicated region
    $region2: #{rl_model_forward.1} parent=1 // pred_check
      _
    $region3: #{rl_model_forward.1} parent=1 // pred_check_branch
      %15 = sbr.rel (0) target = $region5
    $region4: #{rl_model_forward.1} parent=1 // pred_region
      _
    $region5: #{rl_model_forward.1} parent=1 // pred_fallthru
      _
    // Predicated region
    $region6: #{rl_model_forward.1} parent=1 // pred_check
      _
    $region7: #{rl_model_forward.1} parent=1 // pred_check_branch
      %17 = sbr.rel (0) target = $region9
    $region8: #{rl_model_forward.1} parent=1 // pred_region
      _
    $region9: #{rl_model_forward.1} parent=1 // pred_fallthru
      _
    // Predicated region
    $region10: #{rl_model_forward.1} parent=1 // pred_check
      _
    $region11: #{rl_model_forward.1} parent=1 // pred_check_branch
      %19 = sbr.rel (0) target = $region13
    $region12: #{rl_model_forward.1} parent=1 // pred_region
      _
    $region13: #{rl_model_forward.1} parent=1 // pred_fallthru
      _
    // Predicated region
    $region14: #{rl_model_forward.1} parent=1 // pred_check
      _
    $region15: #{rl_model_forward.1} parent=1 // pred_check_branch
      %21 = sbr.rel (0) target = $region17
    $region16: #{rl_model_forward.1} parent=1 // pred_region
      %23 = vsyncadd [#allocation3], 0
      %s24 = sshll.u32 %s3, 4
      %s25 = int_to_ptr.hbm [resolvable:$true] %s24
      %s26 = sshll.u32 [#allocation2], 4
      %s27 = int_to_ptr.vmem [resolvable:$true] %s26
      %32 = dma.hbm_to_vmem [thread:$0]  %s25, 1024, %s27, [#allocation3], 64, 64, 4
    $region17: #{rl_model_forward.1} parent=1 // pred_fallthru
      _
    // Predicated region
    $region18: #{rl_model_forward.1} parent=1 // pred_check
      _
    $region19: #{rl_model_forward.1} parent=1 // pred_check_branch
      %34 = sbr.rel (0) target = $region21
    $region20: #{rl_model_forward.1} parent=1 // pred_region
      _
    $region21: #{rl_model_forward.1} parent=1 // pred_fallthru
      _
    // Predicated region
    $region22: #{rl_model_forward.1} parent=1 // pred_check
      _
    $region23: #{rl_model_forward.1} parent=1 // pred_check_branch
      %36 = sbr.rel (0) target = $region25
    $region24: #{rl_model_forward.1} parent=1 // pred_region
      %38 = vsyncadd [#allocation5], 0
      %s39 = sshll.u32 %s5, 4
      %s40 = int_to_ptr.hbm [resolvable:$true] %s39
      %s41 = sshll.u32 [#allocation4], 4
      %s42 = int_to_ptr.vmem [resolvable:$true] %s41
      %47 = dma.hbm_to_vmem [thread:$0]  %s40, 1024, %s42, [#allocation5], 64, 64, 4
    $region25: #{rl_model_forward.1} parent=1 // pred_fallthru
      _
    // Predicated region
    $region26: #{rl_model_forward.1} parent=1 // pred_check
      _
    $region27: #{rl_model_forward.1} parent=1 // pred_check_branch
      %49 = sbr.rel (0) target = $region29
    $region28: #{rl_model_forward.1} parent=1 // pred_region
      _
    $region29: #{rl_model_forward.1} parent=1 // pred_fallthru
      _
    // Predicated region
    $region30: #{rl_model_forward.1} parent=1 // pred_check
      _
    $region31: #{rl_model_forward.1} parent=1 // pred_check_branch
      %51 = sbr.rel (0) target = $region33
    $region32: #{rl_model_forward.1} parent=1 // pred_region
      %53 = dma.done [#allocation3], 1024
    $region33: #{rl_model_forward.1} parent=1 // pred_fallthru
      _
    // Predicated region
    $region34: #{rl_model_forward.1} parent=1 // pred_check
      _
    $region35: #{rl_model_forward.1} parent=1 // pred_check_branch
      %55 = sbr.rel (0) target = $region37
    $region36: #{rl_model_forward.1} parent=1 // pred_region
      %57 = dma.done [#allocation5], 1024
    $region37: #{rl_model_forward.1} parent=1 // pred_fallthru
      _
    %v59 = vld [vmem:[%s0] sm:$0xff]
    %v60 = vld [vmem:[%s0 + $0x8] sm:$0xff]
    %v61 = vpack.c.bf16 %v60, %v59
    %v62 = vld [vmem:[%s1] sm:$0xf]
    %v63 = vld [vmem:[%s1 + $0x4] sm:$0xf]
    %v64 = vld [vmem:[%s1 + $0x8] sm:$0xf]
    %v65 = vld [vmem:[%s1 + $0xc] sm:$0xf]
    %v66 = vld [vmem:[%s2] sm:$0x1]
    %v68 = vperm.slane %v66, 0
    %v74 = vunpack.c.l.b16 %v62
    %v75 = vunpack.c.l.b16 %v63
    %v76 = vunpack.c.l.b16 %v64
    %v77 = vunpack.c.l.b16 %v65
    %v78 = vpack.c.b16 %v75, %v74
    %v79 = vpack.c.b16 %v77, %v76
    %vm82 = vcmask 261120
    %v84 = vsel %vm82, %v61, 0
    %86 = vmatpush.bf16.msra.mxu0 0
    %87 = vmatpush.bf16.msra.mxu0 0
    %88 = vmatpush.bf16.msra.mxu0 0
    %89 = vmatpush.bf16.msra.mxu0 0
    %90 = vmatpush.bf16.msra.mxu0 0
    %91 = vmatpush.bf16.msra.mxu0 0
    %92 = vmatpush.bf16.msra.mxu0 %v79
    %93 = vmatpush.bf16.msra.mxu0 %v78
    %94 = vmatmul.bf16.gmra.mxu0 %v84
    %v95 = vpop.f32.mrf.mxu0
    %v96 = vadd.f32 %v68, %v95
    %v97 = vpop.f32.mrf.mxu0
    %v98 = vadd.f32 %v68, %v97
    %99 = vdwg.mxu0
    %v100 = vmax.f32 %v96, 0.0
    %v101 = vmax.f32 %v98, 0.0
    %v102 = vpack.c.bf16 %v101, %v100
    %v103 = vld [vmem:[#allocation2] sm:$0xf]
    %v104 = vld [vmem:[#allocation2 + $0x4] sm:$0xf]
    %v105 = vld [vmem:[#allocation2 + $0x8] sm:$0xf]
    %v106 = vld [vmem:[#allocation2 + $0xc] sm:$0xf]
    %v107 = vld [vmem:[#allocation2 + $0x10] sm:$0xf]
    %v108 = vld [vmem:[#allocation2 + $0x14] sm:$0xf]
    %v109 = vld [vmem:[#allocation2 + $0x18] sm:$0xf]
    %v110 = vld [vmem:[#allocation2 + $0x1c] sm:$0xf]
    %v111 = vld [vmem:[#allocation2 + $0x20] sm:$0xf]
    %v112 = vld [vmem:[#allocation2 + $0x24] sm:$0xf]
    %v113 = vld [vmem:[#allocation2 + $0x28] sm:$0xf]
    %v114 = vld [vmem:[#allocation2 + $0x2c] sm:$0xf]
    %v115 = vld [vmem:[#allocation2 + $0x30] sm:$0xf]
    %v116 = vld [vmem:[#allocation2 + $0x34] sm:$0xf]
    %v117 = vld [vmem:[#allocation2 + $0x38] sm:$0xf]
    %v118 = vld [vmem:[#allocation2 + $0x3c] sm:$0xf]
    %v119 = vld [vmem:[%s4] sm:$0x1]
    %v121 = vperm.slane %v119, 0
    %v139 = vunpack.c.l.b16 %v103
    %v140 = vunpack.c.l.b16 %v104
    %v141 = vunpack.c.l.b16 %v105
    %v142 = vunpack.c.l.b16 %v106
    %v143 = vunpack.c.l.b16 %v107
    %v144 = vunpack.c.l.b16 %v108
    %v145 = vunpack.c.l.b16 %v109
    %v146 = vunpack.c.l.b16 %v110
    %v147 = vunpack.c.l.b16 %v111
    %v148 = vunpack.c.l.b16 %v112
    %v149 = vunpack.c.l.b16 %v113
    %v150 = vunpack.c.l.b16 %v114
    %v151 = vunpack.c.l.b16 %v115
    %v152 = vunpack.c.l.b16 %v116
    %v153 = vunpack.c.l.b16 %v117
    %v154 = vunpack.c.l.b16 %v118
    %v155 = vpack.c.b16 %v140, %v139
    %v156 = vpack.c.b16 %v142, %v141
    %v157 = vpack.c.b16 %v144, %v143
    %v158 = vpack.c.b16 %v146, %v145
    %v159 = vpack.c.b16 %v148, %v147
    %v160 = vpack.c.b16 %v150, %v149
    %v161 = vpack.c.b16 %v152, %v151
    %v162 = vpack.c.b16 %v154, %v153
    %171 = vmatpush.bf16.msra.mxu0 %v162
    %172 = vmatpush.bf16.msra.mxu0 %v161
    %173 = vmatpush.bf16.msra.mxu0 %v160
    %174 = vmatpush.bf16.msra.mxu0 %v159
    %175 = vmatpush.bf16.msra.mxu0 %v158
    %176 = vmatpush.bf16.msra.mxu0 %v157
    %177 = vmatpush.bf16.msra.mxu0 %v156
    %178 = vmatpush.bf16.msra.mxu0 %v155
    %179 = vmatmul.bf16.gmra.mxu0 %v102
    %v180 = vpop.f32.mrf.mxu0
    %v181 = vadd.f32 %v121, %v180
    %v182 = vpop.f32.mrf.mxu0
    %v183 = vadd.f32 %v121, %v182
    %184 = vdwg.mxu0
    %v185 = vmax.f32 %v181, 0.0
    %v186 = vmax.f32 %v183, 0.0
    %v187 = vpack.c.bf16 %v186, %v185
    %v188 = vld [vmem:[#allocation4] sm:$0xf]
    %v189 = vld [vmem:[#allocation4 + $0x4] sm:$0xf]
    %v190 = vld [vmem:[#allocation4 + $0x8] sm:$0xf]
    %v191 = vld [vmem:[#allocation4 + $0xc] sm:$0xf]
    %v192 = vld [vmem:[#allocation4 + $0x10] sm:$0xf]
    %v193 = vld [vmem:[#allocation4 + $0x14] sm:$0xf]
    %v194 = vld [vmem:[#allocation4 + $0x18] sm:$0xf]
    %v195 = vld [vmem:[#allocation4 + $0x1c] sm:$0xf]
    %v196 = vld [vmem:[#allocation4 + $0x20] sm:$0xf]
    %v197 = vld [vmem:[#allocation4 + $0x24] sm:$0xf]
    %v198 = vld [vmem:[#allocation4 + $0x28] sm:$0xf]
    %v199 = vld [vmem:[#allocation4 + $0x2c] sm:$0xf]
    %v200 = vld [vmem:[#allocation4 + $0x30] sm:$0xf]
    %v201 = vld [vmem:[#allocation4 + $0x34] sm:$0xf]
    %v202 = vld [vmem:[#allocation4 + $0x38] sm:$0xf]
    %v203 = vld [vmem:[#allocation4 + $0x3c] sm:$0xf]
    %v204 = vld [vmem:[%s6] sm:$0x1]
    %v206 = vperm.slane %v204, 0
    %v224 = vunpack.c.l.b16 %v188
    %v225 = vunpack.c.l.b16 %v189
    %v226 = vunpack.c.l.b16 %v190
    %v227 = vunpack.c.l.b16 %v191
    %v228 = vunpack.c.l.b16 %v192
    %v229 = vunpack.c.l.b16 %v193
    %v230 = vunpack.c.l.b16 %v194
    %v231 = vunpack.c.l.b16 %v195
    %v232 = vunpack.c.l.b16 %v196
    %v233 = vunpack.c.l.b16 %v197
    %v234 = vunpack.c.l.b16 %v198
    %v235 = vunpack.c.l.b16 %v199
    %v236 = vunpack.c.l.b16 %v200
    %v237 = vunpack.c.l.b16 %v201
    %v238 = vunpack.c.l.b16 %v202
    %v239 = vunpack.c.l.b16 %v203
    %v240 = vpack.c.b16 %v225, %v224
    %v241 = vpack.c.b16 %v227, %v226
    %v242 = vpack.c.b16 %v229, %v228
    %v243 = vpack.c.b16 %v231, %v230
    %v244 = vpack.c.b16 %v233, %v232
    %v245 = vpack.c.b16 %v235, %v234
    %v246 = vpack.c.b16 %v237, %v236
    %v247 = vpack.c.b16 %v239, %v238
    %256 = vmatpush.bf16.msra.mxu0 %v247
    %257 = vmatpush.bf16.msra.mxu0 %v246
    %258 = vmatpush.bf16.msra.mxu0 %v245
    %259 = vmatpush.bf16.msra.mxu0 %v244
    %260 = vmatpush.bf16.msra.mxu0 %v243
    %261 = vmatpush.bf16.msra.mxu0 %v242
    %262 = vmatpush.bf16.msra.mxu0 %v241
    %263 = vmatpush.bf16.msra.mxu0 %v240
    %264 = vmatmul.bf16.gmra.mxu0 %v187
    %v265 = vpop.f32.mrf.mxu0
    %v266 = vadd.f32 %v206, %v265
    %v267 = vpop.f32.mrf.mxu0
    %v268 = vadd.f32 %v206, %v267
    %269 = vdwg.mxu0
    %270 = vmax.xlane.f32.xlu0 %v266
    %v271 = vpop.xlane.xlu0 %270
    %272 = vmax.xlane.f32.xlu0 %v268
    %v273 = vpop.xlane.xlu0 %272
    %v274 = vsub.f32 %v266, %v271
    %v275 = vsub.f32 %v268, %v273
    %v276 = vmul.f32 %v274, 1.442695
    %v277 = vpow.pop %v276
    %v278 = vmul.f32 %v275, 1.442695
    %v279 = vpow.pop %v278
    %280 = vadd.xlane.f32.xlu0 %v277
    %v281 = vpop.xlane.xlu0 %280
    %282 = vadd.xlane.f32.xlu0 %v279
    %v283 = vpop.xlane.xlu0 %282
    %v284 = vrcp.pop %v281
    %v285 = vrcp.pop %v283
    %v286 = vmul.f32 %v277, %v284
    %v287 = vmul.f32 %v279, %v285
    %vm288 = vcmask 80896
    %289 = vst.msk [vmem:[%s7] sm:$0xff] %vm288, %v286
    %290 = vst.msk [vmem:[%s7 + $0x8] sm:$0xff] %vm288, %v287
    // Predicated region
    $region38: #{rl_model_forward.1} parent=1 // pred_check
      _
    $region39: #{rl_model_forward.1} parent=1 // pred_check_branch
      %292 = sbr.rel (0) target = $region41
    $region40: #{rl_model_forward.1} parent=1 // pred_region
      _
    $region41: #{rl_model_forward.1} parent=1 // pred_fallthru
      _
    // Predicated region
    $region42: #{rl_model_forward.1} parent=1 // pred_check
      _
    $region43: #{rl_model_forward.1} parent=1 // pred_check_branch
      %294 = sbr.rel (0) target = $region45
    $region44: #{rl_model_forward.1} parent=1 // pred_region
      _
    $region45: #{rl_model_forward.1} parent=1 // pred_fallthru
      _
    %295 = vsyncpa [#allocation3], 1
    %296 = vsyncpa [#allocation5], 1

</llo_original>
